<compile_context>
chip_gen: v6e
topology: v6e:2x2x1
jax: 0.10.0
libtpu: 0.0.40
codegen_flags: <defaults>
</compile_context>

<pallas_src>
import functools
import math

import jax
import jax.numpy as jnp
from jax import lax
from jax.experimental import pallas as pl
from jax.experimental.pallas import tpu as pltpu

NEG_INF = -1e30   # finite mask bias: no -inf NaN hazard


def _pick_tile(size, target, align):
    """Largest tile <= target that divides `size` and is `align`-aligned;
    falls back to the full dim (block == full array dim is always legal)."""
    if size <= target:
        return size
    t = (target // align) * align
    while t >= align:
        if size % t == 0:
            return t
        t -= align
    return size


def _pick_head_block(H, D):
    """Smallest head group whose combined width is MXU friendly (256, then 128
    lanes); falls back to all heads (block width == full N is always legal)."""
    for align in (256, 128):
        for hb in range(1, H + 1):
            if H % hb == 0 and (hb * D) % align == 0:
                return hb
    return H


# ---------------------------------------------------------------------------
# Tiled linear:  y = x @ w_t   (w_t pre-transposed once to (K, N))
# ---------------------------------------------------------------------------

def _linear_kernel(x_ref, w_ref, o_ref, acc_ref):
    @pl.when(pl.program_id(2) == 0)
    def _():
        acc_ref[...] = jnp.zeros_like(acc_ref)

    acc_ref[...] += jax.lax.dot_general(
        x_ref[...], w_ref[...], (((1,), (0,)), ((), ())),
        preferred_element_type=jnp.float32)

    @pl.when(pl.program_id(2) == pl.num_programs(2) - 1)
    def _():
        o_ref[...] = acc_ref[...].astype(o_ref.dtype)


def linear(x2d, w_t, *, tm=512, tn=256, tk=512):
    M, K = x2d.shape
    K2, N = w_t.shape
    assert K == K2
    tm = _pick_tile(M, tm, 8)
    tn = _pick_tile(N, tn, 128)
    tk = _pick_tile(K, tk, 128)
    grid = (M // tm, N // tn, K // tk)
    return pl.pallas_call(
        _linear_kernel,
        out_shape=jax.ShapeDtypeStruct((M, N), x2d.dtype),
        grid=grid,
        in_specs=[pl.BlockSpec((tm, tk), lambda i, j, k: (i, k)),
                  pl.BlockSpec((tk, tn), lambda i, j, k: (k, j))],
        out_specs=pl.BlockSpec((tm, tn), lambda i, j, k: (i, j)),
        scratch_shapes=[pltpu.VMEM((tm, tn), jnp.float32)],
        compiler_params=pltpu.CompilerParams(
            dimension_semantics=("parallel", "parallel", "arbitrary")),
    )(x2d, w_t)


# ---------------------------------------------------------------------------
# Projection with fused head split + (0,2,1,3) transpose:
#   (B*S, K) @ (K, H*D)  ->  (B, H, S, D)    (no separate transpose HBM pass)
# ---------------------------------------------------------------------------

def _proj_heads_kernel(x_ref, w_ref, o_ref, acc_ref, *, hb, head_dim):
    @pl.when(pl.program_id(3) == 0)
    def _():
        acc_ref[...] = jnp.zeros_like(acc_ref)

    acc_ref[...] += jax.lax.dot_general(
        x_ref[...], w_ref[...], (((1,), (0,)), ((), ())),
        preferred_element_type=jnp.float32)

    @pl.when(pl.program_id(3) == pl.num_programs(3) - 1)
    def _():
        acc = acc_ref[...]
        for hh in range(hb):    # hb is small & static: per-head lane slice store
            o_ref[0, hh] = acc[:, hh * head_dim:(hh + 1) * head_dim].astype(
                o_ref.dtype)


def proj_to_heads(x2d, w_t, B, S, H, head_dim, *, ts=256, tk=512):
    M, K = x2d.shape
    assert M == B * S and w_t.shape == (K, H * head_dim)
    ts = _pick_tile(S, ts, 8)
    tk = _pick_tile(K, tk, 128)
    hb = _pick_head_block(H, head_dim)
    n_s = S // ts
    grid = (B, H // hb, n_s, K // tk)
    return pl.pallas_call(
        functools.partial(_proj_heads_kernel, hb=hb, head_dim=head_dim),
        out_shape=jax.ShapeDtypeStruct((B, H, S, head_dim), x2d.dtype),
        grid=grid,
        in_specs=[
            pl.BlockSpec((ts, tk), lambda b, h, si, k: (b * n_s + si, k)),
            pl.BlockSpec((tk, hb * head_dim), lambda b, h, si, k: (k, h)),
        ],
        out_specs=pl.BlockSpec((1, hb, ts, head_dim),
                               lambda b, h, si, k: (b, h, si, 0)),
        scratch_shapes=[pltpu.VMEM((ts, hb * head_dim), jnp.float32)],
        compiler_params=pltpu.CompilerParams(
            dimension_semantics=("parallel", "parallel", "parallel",
                                 "arbitrary")),
    )(x2d, w_t)


# ---------------------------------------------------------------------------
# Flash attention core (online softmax, fused RoPE, in-kernel causal mask,
# GQA head grouping, causal tile skipping)
# ---------------------------------------------------------------------------

def _flash_attn_kernel(q_ref, k_ref, v_ref, ropeq_ref, ropek_ref, o_ref,
                       m_sc, l_sc, acc_sc, q_sc,
                       *, scale, rep, tq, tkv, head_dim):
    qi = pl.program_id(2)
    kv = pl.program_id(3)
    dh = head_dim // 2

    @pl.when(kv == 0)
    def _():
        m_sc[...] = jnp.full_like(m_sc, NEG_INF)
        l_sc[...] = jnp.zeros_like(l_sc)
        acc_sc[...] = jnp.zeros_like(acc_sc)
        # Fused RoPE on q (half-split form; features were de-interleaved at
        # param-prep time) + 1/sqrt(D) scale fold, computed once per q tile.
        q = q_ref[0].astype(jnp.float32)          # (rep, tq, D)
        cq = ropeq_ref[0]                         # (tq, D//2)
        sq = ropeq_ref[1]
        q1 = q[..., :dh]
        q2 = q[..., dh:]
        qr = jnp.concatenate([q1 * cq - q2 * sq, q2 * cq + q1 * sq], axis=-1)
        q_sc[...] = (qr * scale).reshape(rep * tq, head_dim).astype(q_sc.dtype)

    # Skip kv tiles entirely above the causal diagonal.
    @pl.when(kv * tkv <= qi * tq + tq - 1)
    def _():
        kx = k_ref[0, 0]                          # (tkv, D) native dtype
        kf = kx.astype(jnp.float32)
        ck = ropek_ref[0]                         # (tkv, D//2)
        sk = ropek_ref[1]
        k1 = kf[..., :dh]
        k2 = kf[..., dh:]
        kr = jnp.concatenate([k1 * ck - k2 * sk, k2 * ck + k1 * sk],
                             axis=-1).astype(kx.dtype)
        v = v_ref[0, 0]                           # (tkv, D)

        s = jax.lax.dot_general(q_sc[...], kr, (((1,), (1,)), ((), ())),
                                preferred_element_type=jnp.float32)
        # In-kernel causal mask — no (S,S) mask DMA.
        rows = lax.broadcasted_iota(jnp.int32, s.shape, 0)
        cols = lax.broadcasted_iota(jnp.int32, s.shape, 1)
        row_pos = qi * tq + (rows % tq)           # rows stack rep heads
        col_pos = kv * tkv + cols
        s = jnp.where(row_pos >= col_pos, s, NEG_INF)

        m_prev = m_sc[...]
        m_new = jnp.maximum(m_prev, jnp.max(s, axis=-1, keepdims=True))
        alpha = jnp.exp(m_prev - m_new)
        p = jnp.exp(s - m_new)
        l_sc[...] = alpha * l_sc[...] + jnp.sum(p, axis=-1, keepdims=True)
        acc_sc[...] = alpha * acc_sc[...] + jnp.dot(
            p.astype(v.dtype), v, preferred_element_type=jnp.float32)
        m_sc[...] = m_new

    @pl.when(kv == pl.num_programs(3) - 1)
    def _():
        inv_l = pl.reciprocal(l_sc[...], approx=True)   # EUP slot, ~free
        o_ref[0] = (acc_sc[...] * inv_l).reshape(
            rep, tq, head_dim).astype(o_ref.dtype)


def attention_core(q, k, v, rope, scale, *, tq=256, tkv=256):
    B, H, S, D = q.shape
    _, Hkv, _, _ = k.shape
    rep = H // Hkv
    tq = _pick_tile(S, tq, 8)
    tkv = _pick_tile(S, tkv, 128)
    grid = (B, Hkv, S // tq, S // tkv)

    def kv_idx(b, h, qi, ki):
        # Clamp to the last causally-needed tile so skipped (future) kv tiles
        # re-use the previous DMA instead of fetching unused K/V.
        last = (qi * tq + tq - 1) // tkv
        return (b, h, jnp.minimum(ki, last), 0)

    def ropek_idx(b, h, qi, ki):
        last = (qi * tq + tq - 1) // tkv
        return (0, jnp.minimum(ki, last), 0)

    return pl.pallas_call(
        functools.partial(_flash_attn_kernel, scale=scale, rep=rep,
                          tq=tq, tkv=tkv, head_dim=D),
        out_shape=jax.ShapeDtypeStruct((B, H, S, D), q.dtype),
        grid=grid,
        in_specs=[
            # GQA: all `rep` query heads of a KV group per step.
            pl.BlockSpec((1, rep, tq, D), lambda b, h, qi, ki: (b, h, qi, 0)),
            pl.BlockSpec((1, 1, tkv, D), kv_idx),
            pl.BlockSpec((1, 1, tkv, D), kv_idx),
            pl.BlockSpec((2, tq, D // 2), lambda b, h, qi, ki: (0, qi, 0)),
            pl.BlockSpec((2, tkv, D // 2), ropek_idx),
        ],
        out_specs=pl.BlockSpec((1, rep, tq, D),
                               lambda b, h, qi, ki: (b, h, qi, 0)),
        scratch_shapes=[pltpu.VMEM((rep * tq, 1), jnp.float32),
                        pltpu.VMEM((rep * tq, 1), jnp.float32),
                        pltpu.VMEM((rep * tq, D), jnp.float32),
                        pltpu.VMEM((rep * tq, D), q.dtype)],
        compiler_params=pltpu.CompilerParams(
            dimension_semantics=("parallel", "parallel", "parallel",
                                 "arbitrary")),
    )(q, k, v, rope, rope)


# ---------------------------------------------------------------------------
# One-time parameter / table preparation (amortized over all calls)
# ---------------------------------------------------------------------------

def prepare_params(params, *, n_head, n_local_heads, head_dim):
    dim = n_head * head_dim
    kv_size = n_local_heads * head_dim
    w = params["wqkv"]                                   # (N, K) torch layout
    wq, wk, wv = w[:dim], w[dim:dim + kv_size], w[dim + kv_size:]

    # De-interleave RoPE feature pairs per head (even features first, odd
    # second).  QK^T is invariant to this shared permutation; in-kernel RoPE
    # becomes a cheap half-split rotation.
    perm = jnp.concatenate([jnp.arange(0, head_dim, 2),
                            jnp.arange(1, head_dim, 2)])

    def permute_heads(wx, H):
        wx = wx.reshape(H, head_dim, dim)
        return wx[:, perm, :].reshape(H * head_dim, dim)

    wq = permute_heads(wq, n_head)
    wk = permute_heads(wk, n_local_heads)

    # One-time transpose to (K, N) — matmuls then contract the RHS leading dim.
    return {
        "wq_t": jnp.asarray(wq.T),
        "wk_t": jnp.asarray(wk.T),
        "wv_t": jnp.asarray(wv.T),
        "wo_t": jnp.asarray(params["wo"].T),
    }


def build_rope_table(freqs_cis):
    # freqs_cis: (S, D//2, 2) with [..., 0]=cos, [..., 1]=sin -> (2, S, D//2)
    cos = freqs_cis[..., 0].astype(jnp.float32)
    sin = freqs_cis[..., 1].astype(jnp.float32)
    return jnp.stack([cos, sin], axis=0)


# ---------------------------------------------------------------------------
# Forward pass
# ---------------------------------------------------------------------------

def attention_forward(prepared, x, rope, mask, *, n_head, n_local_heads,
                      head_dim):
    # `mask` accepted for interface parity; the fused kernel assumes the
    # standard causal mask (generated in-kernel).
    del mask
    bsz, seqlen, dim = x.shape
    x2d = x.reshape(bsz * seqlen, dim)

    # Projections write directly into (B, H, S, D): split + transpose fused.
    q = proj_to_heads(x2d, prepared["wq_t"], bsz, seqlen, n_head, head_dim)
    k = proj_to_heads(x2d, prepared["wk_t"], bsz, seqlen, n_local_heads,
                      head_dim)
    v = proj_to_heads(x2d, prepared["wv_t"], bsz, seqlen, n_local_heads,
                      head_dim)

    scale = 1.0 / math.sqrt(head_dim)
    y = attention_core(q, k, v, rope, scale)     # RoPE + causal mask + GQA fused

    # TODO(synk): fuse this head->hidden transpose into the wo matmul in_spec.
    y2d = jnp.transpose(y, (0, 2, 1, 3)).reshape(bsz * seqlen, dim)
    return linear(y2d, prepared["wo_t"]).reshape(bsz, seqlen, dim)


# ---------------------------------------------------------------------------
# Pure-JAX reference (matches the PyTorch module, original weight layout)
# ---------------------------------------------------------------------------

def apply_rotary_emb(x, freqs_cis):
    xs = x.astype(jnp.float32).reshape(*x.shape[:-1], -1, 2)
    fc = freqs_cis.reshape(1, xs.shape[1], 1, xs.shape[3], 2)
    xr = xs[..., 0] * fc[..., 0] - xs[..., 1] * fc[..., 1]
    xi = xs[..., 1] * fc[..., 0] + xs[..., 0] * fc[..., 1]
    out = jnp.stack([xr, xi], axis=-1).reshape(x.shape)
    return out.astype(x.dtype)


def reference_forward(params, x, freqs_cis, mask, *, n_head, n_local_heads,
                      head_dim):
    bsz, seqlen, dim = x.shape
    kv_size = n_local_heads * head_dim
    qkv = jnp.einsum("bsd,nd->bsn", x, params["wqkv"])
    q, k, v = jnp.split(qkv, [dim, dim + kv_size], axis=-1)
    q = q.reshape(bsz, seqlen, n_head, head_dim)
    k = k.reshape(bsz, seqlen, n_local_heads, head_dim)
    v = v.reshape(bsz, seqlen, n_local_heads, head_dim)
    q = apply_rotary_emb(q, freqs_cis)
    k = apply_rotary_emb(k, freqs_cis)
    q, k, v = (jnp.transpose(t, (0, 2, 1, 3)) for t in (q, k, v))
    rep = n_head // n_local_heads
    k = jnp.repeat(k, rep, axis=1)
    v = jnp.repeat(v, rep, axis=1)
    scale = 1.0 / math.sqrt(head_dim)
    s = jnp.einsum("bhqd,bhkd->bhqk", q, k) * scale
    s = jnp.where(mask, s, -jnp.inf)
    p = jax.nn.softmax(s, axis=-1)
    y = jnp.einsum("bhqk,bhkd->bhqd", p, v)
    y = jnp.transpose(y, (0, 2, 1, 3)).reshape(bsz, seqlen, dim)
    return jnp.einsum("bsd,nd->bsn", y, params["wo"])


# ---------------------------------------------------------------------------

def _run_case(key, *, bsz, seqlen, n_head, n_local_heads, head_dim,
              rope_base=10000.0):
    dim = n_head * head_dim
    total_head_dim = (n_head + 2 * n_local_heads) * head_dim

    k1, k2, k3 = jax.random.split(key, 3)
    params = {
        "wqkv": 0.02 * jax.random.normal(k1, (total_head_dim, dim),
                                         jnp.float32),
        "wo": 0.02 * jax.random.normal(k2, (dim, dim), jnp.float32),
    }
    x = jax.random.normal(k3, (bsz, seqlen, dim), jnp.float32)

    inv_freq = 1.0 / (rope_base ** (
        jnp.arange(0, head_dim, 2, dtype=jnp.float32) / head_dim))
    t = jnp.arange(seqlen, dtype=jnp.float32)
    freqs = jnp.outer(t, inv_freq)
    freqs_cis = jnp.stack([jnp.cos(freqs), jnp.sin(freqs)], axis=-1)
    mask = jnp.tril(jnp.ones((seqlen, seqlen), dtype=bool))

    prepared = prepare_params(params, n_head=n_head,
                              n_local_heads=n_local_heads, head_dim=head_dim)
    rope = build_rope_table(freqs_cis)

    y = attention_forward(prepared, x, rope, mask, n_head=n_head,
                          n_local_heads=n_local_heads, head_dim=head_dim)
    y = jax.block_until_ready(y)

    y_ref = reference_forward(params, x, freqs_cis, mask, n_head=n_head,
                              n_local_heads=n_local_heads, head_dim=head_dim)
    assert y.shape == (bsz, seqlen, dim)
    err = float(jnp.max(jnp.abs(y - y_ref)))
    assert jnp.allclose(y, y_ref, atol=1e-2, rtol=5e-2), err


if __name__ == "__main__":
    key = jax.random.PRNGKey(0)
    k_small, k_big = jax.random.split(key)

    # Small config (full-block fallback paths).
    _run_case(k_small, bsz=2, seqlen=8, n_head=4, n_local_heads=2, head_dim=16)

    # Tiled config: exercises (8,128)-aligned tiling, GQA head grouping,
    # multi-tile causal skipping and the clamped K/V index maps.
    _run_case(k_big, bsz=2, seqlen=512, n_head=4, n_local_heads=2,
              head_dim=128)

    print("KERNEL_OK")
</pallas_src>

<mosaic_0001>
module attributes {stable_mosaic.version = 11 : i64} {
  func.func @_proj_heads_kernel(%arg0: i32, %arg1: i32, %arg2: i32, %arg3: i32, %arg4: memref<8x64xf32, #tpu.memory_space<vmem>>, %arg5: memref<64x64xf32, #tpu.memory_space<vmem>>, %arg6: memref<1x4x8x16xf32, #tpu.memory_space<vmem>>, %arg7: memref<8x64xf32, #tpu.memory_space<vmem>>) attributes {dimension_semantics = [#tpu.dimension_semantics<parallel>, #tpu.dimension_semantics<parallel>, #tpu.dimension_semantics<parallel>, #tpu.dimension_semantics<arbitrary>], iteration_bounds = array<i64: 2, 1, 1, 1>, scalar_prefetch = 0 : i64, scratch_operands = 1 : i64, tpu.core_type = #tpu.core_type<tc>, window_params = [{transform_indices = @transform_0, window_bounds = array<i64: 8, 64>}, {transform_indices = @transform_1, window_bounds = array<i64: 64, 64>}, {transform_indices = @transform_2, window_bounds = array<i64: 1, 4, 8, 16>}]} {
    %c0_i32 = arith.constant 0 : i32
    %0 = arith.cmpi eq, %arg3, %c0_i32 : i32
    %1 = arith.extui %0 : i1 to i32
    %c0_i32_0 = arith.constant 0 : i32
    %2 = arith.cmpi ne, %1, %c0_i32_0 : i32
    scf.if %2 {
      %cst_10 = arith.constant 0.000000e+00 : f32
      %12 = vector.broadcast %cst_10 : f32 to vector<8x64xf32>
      %c0_11 = arith.constant 0 : index
      %c0_12 = arith.constant 0 : index
      %13 = vector.load %arg7[%c0_11, %c0_12] : memref<8x64xf32, #tpu.memory_space<vmem>>, vector<8x64xf32>
      tpu.vector_store %arg7[%c0_11, %c0_12], %12 {strides = array<i32>} : memref<8x64xf32, #tpu.memory_space<vmem>>, vector<8x64xf32>,
    } else {
    }
    %c0 = arith.constant 0 : index
    %c0_1 = arith.constant 0 : index
    %3 = vector.load %arg7[%c0, %c0_1] : memref<8x64xf32, #tpu.memory_space<vmem>>, vector<8x64xf32>
    %c0_2 = arith.constant 0 : index
    %c0_3 = arith.constant 0 : index
    %4 = vector.load %arg4[%c0_2, %c0_3] : memref<8x64xf32, #tpu.memory_space<vmem>>, vector<8x64xf32>
    %c0_4 = arith.constant 0 : index
    %c0_5 = arith.constant 0 : index
    %5 = vector.load %arg5[%c0_4, %c0_5] : memref<64x64xf32, #tpu.memory_space<vmem>>, vector<64x64xf32>
    %cst = arith.constant dense<0.000000e+00> : vector<8x64xf32>
    %6 = tpu.matmul %4, %5, %cst {dimension_numbers = #tpu.dot_dimension_numbers<[1], [0], [0], [1], [0, 0, 1, 1], [], []>} : vector<8x64xf32>, vector<64x64xf32>, vector<8x64xf32> -> vector<8x64xf32>
    %7 = arith.addf %3, %6 : vector<8x64xf32>
    %c0_6 = arith.constant 0 : index
    %c0_7 = arith.constant 0 : index
    %8 = vector.load %arg7[%c0_6, %c0_7] : memref<8x64xf32, #tpu.memory_space<vmem>>, vector<8x64xf32>
    tpu.vector_store %arg7[%c0_6, %c0_7], %7 {strides = array<i32>} : memref<8x64xf32, #tpu.memory_space<vmem>>, vector<8x64xf32>,
    %c0_i32_8 = arith.constant 0 : i32
    %9 = arith.cmpi eq, %arg3, %c0_i32_8 : i32
    %10 = arith.extui %9 : i1 to i32
    %c0_i32_9 = arith.constant 0 : i32
    %11 = arith.cmpi ne, %10, %c0_i32_9 : i32
    scf.if %11 {
      %c0_10 = arith.constant 0 : index
      %c0_11 = arith.constant 0 : index
      %12 = vector.load %arg7[%c0_10, %c0_11] : memref<8x64xf32, #tpu.memory_space<vmem>>, vector<8x64xf32>
      %13 = vector.extract_strided_slice %12 {offsets = [0, 0], sizes = [8, 16], strides = [1, 1]} : vector<8x64xf32> to vector<8x16xf32>
      %c0_12 = arith.constant 0 : index
      %c0_13 = arith.constant 0 : index
      %c0_14 = arith.constant 0 : index
      %c0_15 = arith.constant 0 : index
      %14 = vector.load %arg6[%c0_12, %c0_13, %c0_14, %c0_15] : memref<1x4x8x16xf32, #tpu.memory_space<vmem>>, vector<1x1x8x16xf32>
      %15 = vector.shape_cast %14 : vector<1x1x8x16xf32> to vector<8x16xf32>
      %16 = vector.shape_cast %13 : vector<8x16xf32> to vector<1x1x8x16xf32>
      tpu.vector_store %arg6[%c0_12, %c0_13, %c0_14, %c0_15], %16 {strides = array<i32>} : memref<1x4x8x16xf32, #tpu.memory_space<vmem>>, vector<1x1x8x16xf32>,
      %17 = vector.extract_strided_slice %12 {offsets = [0, 16], sizes = [8, 16], strides = [1, 1]} : vector<8x64xf32> to vector<8x16xf32>
      %c0_16 = arith.constant 0 : index
      %c1 = arith.constant 1 : index
      %c0_17 = arith.constant 0 : index
      %c0_18 = arith.constant 0 : index
      %18 = vector.load %arg6[%c0_16, %c1, %c0_17, %c0_18] : memref<1x4x8x16xf32, #tpu.memory_space<vmem>>, vector<1x1x8x16xf32>
      %19 = vector.shape_cast %18 : vector<1x1x8x16xf32> to vector<8x16xf32>
      %20 = vector.shape_cast %17 : vector<8x16xf32> to vector<1x1x8x16xf32>
      tpu.vector_store %arg6[%c0_16, %c1, %c0_17, %c0_18], %20 {strides = array<i32>} : memref<1x4x8x16xf32, #tpu.memory_space<vmem>>, vector<1x1x8x16xf32>,
      %21 = vector.extract_strided_slice %12 {offsets = [0, 32], sizes = [8, 16], strides = [1, 1]} : vector<8x64xf32> to vector<8x16xf32>
      %c0_19 = arith.constant 0 : index
      %c2 = arith.constant 2 : index
      %c0_20 = arith.constant 0 : index
      %c0_21 = arith.constant 0 : index
      %22 = vector.load %arg6[%c0_19, %c2, %c0_20, %c0_21] : memref<1x4x8x16xf32, #tpu.memory_space<vmem>>, vector<1x1x8x16xf32>
      %23 = vector.shape_cast %22 : vector<1x1x8x16xf32> to vector<8x16xf32>
      %24 = vector.shape_cast %21 : vector<8x16xf32> to vector<1x1x8x16xf32>
      tpu.vector_store %arg6[%c0_19, %c2, %c0_20, %c0_21], %24 {strides = array<i32>} : memref<1x4x8x16xf32, #tpu.memory_space<vmem>>, vector<1x1x8x16xf32>,
      %25 = vector.extract_strided_slice %12 {offsets = [0, 48], sizes = [8, 16], strides = [1, 1]} : vector<8x64xf32> to vector<8x16xf32>
      %c0_22 = arith.constant 0 : index
      %c3 = arith.constant 3 : index
      %c0_23 = arith.constant 0 : index
      %c0_24 = arith.constant 0 : index
      %26 = vector.load %arg6[%c0_22, %c3, %c0_23, %c0_24] : memref<1x4x8x16xf32, #tpu.memory_space<vmem>>, vector<1x1x8x16xf32>
      %27 = vector.shape_cast %26 : vector<1x1x8x16xf32> to vector<8x16xf32>
      %28 = vector.shape_cast %25 : vector<8x16xf32> to vector<1x1x8x16xf32>
      tpu.vector_store %arg6[%c0_22, %c3, %c0_23, %c0_24], %28 {strides = array<i32>} : memref<1x4x8x16xf32, #tpu.memory_space<vmem>>, vector<1x1x8x16xf32>,
    } else {
    }
    return
  }
  func.func @transform_0(%arg0: i32, %arg1: i32, %arg2: i32, %arg3: i32) -> (i32, i32) {
    %c1_i32 = arith.constant 1 : i32
    %0 = arith.muli %arg0, %c1_i32 : i32
    %1 = arith.addi %0, %arg2 : i32
    %c0_i32 = arith.constant 0 : i32
    return %1, %arg3 : i32, i32
  }
  func.func @transform_1(%arg0: i32, %arg1: i32, %arg2: i32, %arg3: i32) -> (i32, i32) {
    %c0_i32 = arith.constant 0 : i32
    return %arg3, %arg1 : i32, i32
  }
  func.func @transform_2(%arg0: i32, %arg1: i32, %arg2: i32, %arg3: i32) -> (i32, i32, i32, i32) {
    %c0_i32 = arith.constant 0 : i32
    %c0_i32_0 = arith.constant 0 : i32
    return %arg0, %arg1, %arg2, %c0_i32 : i32, i32, i32, i32
  }
}

</mosaic_0001>

<llo_original>
// kernel: tpu_custom_call.1
$region0: #{tpu_custom_call.1}
  #allocation0 [shape = 'u32[]', space=smem, size = 0x4, offset = 0x4, fixed_abs, tag = 'smem constant byte address 0x4 - core index']
  #allocation1 [shape = 'u32[144,128]{1,0:T(1,128)}', space=vmem, size = 0x12000, scoped, tag = 'internal scratch']
  #allocation2 [shape = 'f32[8,64]{1,0:T(8,128)}', space=vmem, size = 0x1000, scoped, tag = 'scratch operand']
  %s0 = inlined_call_operand.hbm [shape: f32[16,64], index: 0, kind: input, shape index: {}]
  %s1 = inlined_call_operand.hbm [shape: f32[64,64], index: 1, kind: input, shape index: {}]
  %s2 = inlined_call_operand.hbm [shape: f32[2,4,8,16], index: 2, kind: output, shape index: {}]
  %s3 = sld [smem:[#allocation0]]
  $region57: #{tpu_custom_call.1} parent=0
    _
  %s5 = ssub.s32 1, %s3
  %s6 = scalar_select 0, %s5, %s3
  $region1: #{tpu_custom_call.1} parent=0
    #allocation3 [shape = 'u8[8192]{0}', space=vmem, size = 0x2000, scoped, tag = 'input window, operand 0']
    #allocation4 [shape = 's32[2]{0}', space=sflag, size = 0x8, scoped, tag = 'scoped memory for tpu_custom_call.1']
    #allocation5 [shape = 's32[2]{0}', space=sflag, size = 0x8, scoped, tag = 'scoped memory for tpu_custom_call.1']
    #allocation6 [shape = 'u8[32768]{0}', space=vmem, size = 0x8000, scoped, tag = 'input window, operand 1, single buffered']
    #allocation7 [shape = 's32[1]{0}', space=sflag, size = 0x4, scoped, tag = 'scoped memory for tpu_custom_call.1']
    #allocation8 [shape = 'u8[32768]{0}', space=vmem, size = 0x8000, scoped, tag = 'output window, operand 0']
    %7 = vsyncpa [#allocation4], 0
    %s8 = scalar_lea.sflag [#allocation4], 1
    %9 = vsyncpa %s8, 0
    %10 = vsyncpa [#allocation7], 0
    %11 = vsyncpa [#allocation5], 0
    %s12 = scalar_lea.sflag [#allocation5], 1
    %13 = vsyncpa %s12, 0
    loop: start=0, step=1, limit=4
    $region2: #{tpu_custom_call.1} parent=1 // loop_pre_header
      _
    $region3: #{tpu_custom_call.1} parent=1 // loop_header
      %s15 = sphi 0, %s19
      %p16 = scmp.ge.s32.totalorder %s15, 4
      %s22 = sphi 0, %s48
      %s23 = sphi 0, %s44
      %s24 = sphi 0, %s40
      %s25 = sphi 0, %s36
      %s26 = sphi 0, %s22
      %s27 = sphi 0, %s23
      %s28 = sphi 0, %s24
      %s29 = sphi 0, %s25
      %s30 = sphi 0, %s26
      %s31 = sphi 0, %s27
      %s32 = sphi 0, %s28
      %s33 = sphi 0, %s29
      %s55 = sphi 0, %s57
      %s58 = sphi 0, %s55
      %s59 = sphi 0, %s58
      %s75 = sphi 0, %s59
      %s83 = sphi 0, %s85
      %s86 = sphi 0, %s83
      %s87 = sphi 0, %s86
      %s103 = sphi 0, %s87
      %s113 = sphi 0, %s115
      %s116 = sphi 0, %s113
      %s117 = sphi 0, %s116
      %s133 = sphi 0, %s117
    $region4: #{tpu_custom_call.1} parent=1 // loop_header_branch
      %18 = sbr.rel (%p16) target = $region8
    $region5: #{tpu_custom_call.1} parent=1 // loop_body
      %s20 = ssub.s32 %s15, 1
      %s21 = ssub.s32 %s15, 2
      %s34 = sadd.s32 1, %s25
      %p35 = scmp.ge.s32.totalorder %s34, 1
      %s36 = scalar_select %p35, 0, %s34
      %s37 = sadd.s32 1, %s24
      %s38 = scalar_select %p35, %s37, %s24
      %p39 = scmp.ge.s32.totalorder %s38, 1
      %s40 = scalar_select %p39, 0, %s38
      %s41 = sadd.s32 1, %s23
      %s42 = scalar_select %p39, %s41, %s23
      %p43 = scmp.ge.s32.totalorder %s42, 1
      %s44 = scalar_select %p43, 0, %s42
      %s45 = sadd.s32 1, %s22
      %s46 = scalar_select %p43, %s45, %s22
      %p47 = scmp.ge.s32.totalorder %s46, 2
      %s48 = scalar_select %p47, 0, %s46
      %s49 = sadd.s32 %s22, %s24
      %s50 = sadd.s32 %s48, %s40
      %s51 = ssub.s32 %s49, %s50
      %s52 = ssub.s32 %s25, %s36
      %s53 = sor.u32 %s51, %s52
      %p54 = scmp.eq.s32.totalorder %s53, 0
      %s56 = sadd.s32 %s55, 1
      %s57 = scalar_select %p54, %s55, %s56
      %p60 = pneg %p54
      %p61 = scmp.eq.s32.totalorder %s15, 1
      %p62 = por %p60, %p61
      %p63 = scmp.ne.s32.totalorder %s55, %s58
      %p64 = scmp.eq.s32.totalorder %s15, 0
      %p65 = por %p63, %p64
      %p66 = scmp.ne.s32.totalorder %s55, %s58
      %p67 = scmp.eq.s32.totalorder %s20, 1
      %p68 = por %p66, %p67
      %p69 = scmp.ne.s32.totalorder %s58, %s59
      %p70 = scmp.eq.s32.totalorder %s20, 0
      %p71 = por %p69, %p70
      %p72 = scmp.ne.s32.totalorder %s58, %s59
      %p73 = scmp.eq.s32.totalorder %s21, 1
      %p74 = por %p72, %p73
      %p76 = scmp.ne.s32.totalorder %s59, %s75
      %p77 = scmp.eq.s32.totalorder %s21, 0
      %p78 = por %p76, %p77
      %s79 = ssub.s32 %s25, %s36
      %s80 = ssub.s32 %s23, %s44
      %s81 = sor.u32 %s79, %s80
      %p82 = scmp.eq.s32.totalorder %s81, 0
      %s84 = sadd.s32 %s83, 1
      %s85 = scalar_select %p82, %s83, %s84
      %p88 = pneg %p82
      %p89 = scmp.eq.s32.totalorder %s15, 1
      %p90 = por %p88, %p89
      %p91 = scmp.ne.s32.totalorder %s83, %s86
      %p92 = scmp.eq.s32.totalorder %s15, 0
      %p93 = por %p91, %p92
      %p94 = scmp.ne.s32.totalorder %s83, %s86
      %p95 = scmp.eq.s32.totalorder %s20, 1
      %p96 = por %p94, %p95
      %p97 = scmp.ne.s32.totalorder %s86, %s87
      %p98 = scmp.eq.s32.totalorder %s20, 0
      %p99 = por %p97, %p98
      %p100 = scmp.ne.s32.totalorder %s86, %s87
      %p101 = scmp.eq.s32.totalorder %s21, 1
      %p102 = por %p100, %p101
      %p104 = scmp.ne.s32.totalorder %s87, %s103
      %p105 = scmp.eq.s32.totalorder %s21, 0
      %p106 = por %p104, %p105
      %s107 = ssub.s32 %s22, %s48
      %s108 = ssub.s32 %s23, %s44
      %s109 = sor.u32 %s107, %s108
      %s110 = ssub.s32 %s24, %s40
      %s111 = sor.u32 %s109, %s110
      %p112 = scmp.eq.s32.totalorder %s111, 0
      %s114 = sadd.s32 %s113, 1
      %s115 = scalar_select %p112, %s113, %s114
      %p118 = pneg %p112
      %p119 = scmp.eq.s32.totalorder %s15, 1
      %p120 = por %p118, %p119
      %p121 = scmp.ne.s32.totalorder %s113, %s116
      %p122 = scmp.eq.s32.totalorder %s15, 0
      %p123 = por %p121, %p122
      %p124 = scmp.ne.s32.totalorder %s113, %s116
      %p125 = scmp.eq.s32.totalorder %s20, 1
      %p126 = por %p124, %p125
      %p127 = scmp.ne.s32.totalorder %s116, %s117
      %p128 = scmp.eq.s32.totalorder %s20, 0
      %p129 = por %p127, %p128
      %p130 = scmp.ne.s32.totalorder %s116, %s117
      %p131 = scmp.eq.s32.totalorder %s21, 1
      %p132 = por %p130, %p131
      %p134 = scmp.ne.s32.totalorder %s117, %s133
      %p135 = scmp.eq.s32.totalorder %s21, 0
      %p136 = por %p134, %p135
      %p137 = scmp.le.s32.totalorder 1, %s15
      %p138 = scmp.lt.s32.totalorder %s15, 3
      %p139 = pnand %p137, %p138
      %p140 = pneg %p139
      // Predicated region
      $region9: #{tpu_custom_call.1} parent=5 // pred_check
        _
      $region10: #{tpu_custom_call.1} parent=5 // pred_check_branch
        %142 = sbr.rel (%p139) target = $region12
      $region11: #{tpu_custom_call.1} parent=5 // pred_region
        %s143 = ssub.s32 %s15, 1
        // Predicated region
        $region13: #{tpu_custom_call.1} parent=11 // pred_check
          %p144 = pneg %p99
        $region14: #{tpu_custom_call.1} parent=11 // pred_check_branch
          %146 = sbr.rel (%p144) target = $region16
        $region15: #{tpu_custom_call.1} parent=11 // pred_region
          %s147 = smul.u32 8, %s29
          %s149 = ssub.s32 1024, 1024
          %150 = vsyncadd [#allocation7], %s149
          %s151 = sadd.s32 %s27, %s147
          %s152 = smul.addr %s151, 128
          %s153 = scalar_lea.hbm %s1, %s152
          %s154 = sshll.u32 [#allocation6], 4
          %s155 = int_to_ptr.vmem [resolvable:$true] %s154
          %160 = dma.hbm_to_vmem [thread:$0]  %s153, 1024, %s155, [#allocation7], 128, 128, 8
        $region16: #{tpu_custom_call.1} parent=11 // pred_fallthru
          _
      $region12: #{tpu_custom_call.1} parent=5 // pred_fallthru
        _
      %p161 = scmp.lt.s32.totalorder %s15, 2
      // Predicated region
      $region17: #{tpu_custom_call.1} parent=5 // pred_check
        %p162 = pneg %p161
      $region18: #{tpu_custom_call.1} parent=5 // pred_check_branch
        %164 = sbr.rel (%p162) target = $region20
      $region19: #{tpu_custom_call.1} parent=5 // pred_region
        // Predicated region
        $region21: #{tpu_custom_call.1} parent=19 // pred_check
          %p165 = pneg %p65
        $region22: #{tpu_custom_call.1} parent=19 // pred_check_branch
          %167 = sbr.rel (%p165) target = $region24
        $region23: #{tpu_custom_call.1} parent=19 // pred_region
          %s168 = sand.u32 %s55, 1
          %s169 = scalar_lea.sflag [#allocation4], %s168
          %s170 = sand.u32 %s55, 1
          %s171 = smul.addr %s170, 8
          %s172 = scalar_lea.vmem [#allocation3], %s171
          %s173 = sadd.s32 %s22, %s24
          %s175 = ssub.s32 128, 128
          %176 = vsyncadd %s169, %s175
          %s177 = sadd.s32 %s25, %s173
          %s178 = smul.addr %s177, 128
          %s179 = scalar_lea.hbm %s0, %s178
          %s181 = sshll.u32 %s172, 4
          %s182 = int_to_ptr.vmem [resolvable:$true] %s181
          %184 = dma.hbm_to_vmem [thread:$0]  %s179, 128, %s182, %s169
        $region24: #{tpu_custom_call.1} parent=19 // pred_fallthru
          _
      $region20: #{tpu_custom_call.1} parent=5 // pred_fallthru
        _
      %p185 = scmp.le.s32.totalorder 1, %s15
      %p186 = scmp.lt.s32.totalorder %s15, 3
      %p187 = pnand %p185, %p186
      %p188 = pneg %p187
      // Predicated region
      $region25: #{tpu_custom_call.1} parent=5 // pred_check
        _
      $region26: #{tpu_custom_call.1} parent=5 // pred_check_branch
        %190 = sbr.rel (%p187) target = $region28
      $region27: #{tpu_custom_call.1} parent=5 // pred_region
        %s191 = ssub.s32 %s15, 1
        %s192 = sand.u32 %s58, 1
        %s193 = scalar_lea.sflag [#allocation4], %s192
        %s194 = sand.u32 %s58, 1
        %s195 = smul.addr %s194, 8
        %s196 = scalar_lea.vmem [#allocation3], %s195
        // Predicated region
        $region29: #{tpu_custom_call.1} parent=27 // pred_check
          %p197 = pneg %p71
        $region30: #{tpu_custom_call.1} parent=27 // pred_check_branch
          %199 = sbr.rel (%p197) target = $region32
        $region31: #{tpu_custom_call.1} parent=27 // pred_region
          %200 = dma.done %s193, 128
        $region32: #{tpu_custom_call.1} parent=27 // pred_fallthru
          _
        // Predicated region
        $region33: #{tpu_custom_call.1} parent=27 // pred_check
          %p201 = pneg %p99
        $region34: #{tpu_custom_call.1} parent=27 // pred_check_branch
          %203 = sbr.rel (%p201) target = $region36
        $region35: #{tpu_custom_call.1} parent=27 // pred_region
          %204 = dma.done [#allocation7], 1024
        $region36: #{tpu_custom_call.1} parent=27 // pred_fallthru
          _
        %s205 = sand.u32 %s58, 1
        %s206 = scalar_lea.sflag [#allocation4], %s205
        %s207 = sand.u32 %s58, 1
        %s208 = smul.addr %s207, 8
        %s209 = scalar_lea.vmem [#allocation3], %s208
        %p210 = pneg %p71
        %p211 = pneg %p68
        %p212 = pneg %p99
        %p213 = pneg %p96
        %p214 = pneg %p129
        %p215 = pneg %p126
        %s216 = sand.u32 %s116, 1
        %s217 = scalar_lea.sflag [#allocation5], %s216
        %s218 = sand.u32 %s116, 1
        %s219 = smul.addr %s218, 32
        %s220 = scalar_lea.vmem [#allocation8], %s219
        %s221 = sadd.s32 %s26, %s28
        %s222 = smul.u32 8, %s29
        %s223 = smul.u32 4, %s27
        %p224 = scmp.eq.s32.totalorder %s29, 0
        // Predicated region
        $region37: #{tpu_custom_call.1} parent=27 // pred_check
          %p225 = pneg %p224
        $region38: #{tpu_custom_call.1} parent=27 // pred_check_branch
          %227 = sbr.rel (%p225) target = $region40
        $region39: #{tpu_custom_call.1} parent=27 // pred_region
          %vm228 = vcmask 523264
          %229 = vst.msk [vmem:[#allocation2] sm:$0xff] %vm228, 0.0
        $region40: #{tpu_custom_call.1} parent=27 // pred_fallthru
          _
        %v230 = vld [vmem:[#allocation2] sm:$0xff]
        %v231 = vld [vmem:[%s196] sm:$0xff]
        %v232 = vld [vmem:[#allocation6] sm:$0xff]
        %v233 = vld [vmem:[#allocation6 + $0x8] sm:$0xff]
        %v234 = vld [vmem:[#allocation6 + $0x10] sm:$0xff]
        %v235 = vld [vmem:[#allocation6 + $0x18] sm:$0xff]
        %v236 = vld [vmem:[#allocation6 + $0x20] sm:$0xff]
        %v237 = vld [vmem:[#allocation6 + $0x28] sm:$0xff]
        %v238 = vld [vmem:[#allocation6 + $0x30] sm:$0xff]
        %v239 = vld [vmem:[#allocation6 + $0x38] sm:$0xff]
        %vm240 = vcmask 523264
        %v242 = vsel %vm240, %v231, 0
        %244 = vmatprep.subr.mxu0 0.0
        %245 = vmatpush1.msra.mxu0 0.0
        %246 = vmatprep.subr.mxu0 0.0
        %247 = vmatpush1.msra.mxu0 0.0
        %248 = vmatprep.subr.mxu0 0.0
        %249 = vmatpush1.msra.mxu0 0.0
        %250 = vmatprep.subr.mxu0 0.0
        %251 = vmatpush1.msra.mxu0 0.0
        %252 = vmatprep.subr.mxu0 0.0
        %253 = vmatpush1.msra.mxu0 0.0
        %254 = vmatprep.subr.mxu0 0.0
        %255 = vmatpush1.msra.mxu0 0.0
        %256 = vmatprep.subr.mxu0 0.0
        %257 = vmatpush1.msra.mxu0 0.0
        %258 = vmatprep.subr.mxu0 0.0
        %259 = vmatpush1.msra.mxu0 0.0
        %260 = vmatprep.subr.mxu0 0.0
        %261 = vmatpush1.msra.mxu0 %v239
        %262 = vmatprep.subr.mxu0 0.0
        %263 = vmatpush1.msra.mxu0 %v238
        %264 = vmatprep.subr.mxu0 0.0
        %265 = vmatpush1.msra.mxu0 %v237
        %266 = vmatprep.subr.mxu0 0.0
        %267 = vmatpush1.msra.mxu0 %v236
        %268 = vmatprep.subr.mxu0 0.0
        %269 = vmatpush1.msra.mxu0 %v235
        %270 = vmatprep.subr.mxu0 0.0
        %271 = vmatpush1.msra.mxu0 %v234
        %272 = vmatprep.subr.mxu0 0.0
        %273 = vmatpush1.msra.mxu0 %v233
        %274 = vmatprep.subr.mxu0 0.0
        %275 = vmatpush1.msra.mxu0 %v232
        %276 = vmatprep.subr.mxu0 0.0
        %277 = vmatpush2.msra.mxu0 0.0
        %278 = vmatprep.subr.mxu0 0.0
        %279 = vmatpush2.msra.mxu0 0.0
        %280 = vmatprep.subr.mxu0 0.0
        %281 = vmatpush2.msra.mxu0 0.0
        %282 = vmatprep.subr.mxu0 0.0
        %283 = vmatpush2.msra.mxu0 0.0
        %284 = vmatprep.subr.mxu0 0.0
        %285 = vmatpush2.msra.mxu0 0.0
        %286 = vmatprep.subr.mxu0 0.0
        %287 = vmatpush2.msra.mxu0 0.0
        %288 = vmatprep.subr.mxu0 0.0
        %289 = vmatpush2.msra.mxu0 0.0
        %290 = vmatprep.subr.mxu0 0.0
        %291 = vmatpush2.msra.mxu0 0.0
        %292 = vmatprep.subr.mxu0 0.0
        %293 = vmatpush2.msra.mxu0 0.0
        %294 = vmatprep.subr.mxu0 0.0
        %295 = vmatpush2.msra.mxu0 0.0
        %296 = vmatprep.subr.mxu0 0.0
        %297 = vmatpush2.msra.mxu0 0.0
        %298 = vmatprep.subr.mxu0 0.0
        %299 = vmatpush2.msra.mxu0 0.0
        %300 = vmatprep.subr.mxu0 0.0
        %301 = vmatpush2.msra.mxu0 0.0
        %302 = vmatprep.subr.mxu0 0.0
        %303 = vmatpush2.msra.mxu0 0.0
        %304 = vmatprep.subr.mxu0 0.0
        %305 = vmatpush2.msra.mxu0 0.0
        %306 = vmatprep.subr.mxu0 0.0
        %307 = vmatpush2.msra.mxu0 0.0
        %308 = vmatprep.mubr.f32.mxu0 0.0
        %309 = vmatmul.mubr.f32.gmra.mxu0 %v242
        %v310 = vpop.f32.mrf.mxu0
        %v311 = vadd.f32 0.0, %v310
        %v312 = vpop.f32.mrf.mxu0
        %313 = vdwg.mxu0
        %v314 = vadd.f32 %v230, %v311
        %315 = vst.msk [vmem:[#allocation2] sm:$0xff] %vm240, %v314
        // Predicated region
        $region41: #{tpu_custom_call.1} parent=27 // pred_check
          %p316 = pneg %p224
        $region42: #{tpu_custom_call.1} parent=27 // pred_check_branch
          %318 = sbr.rel (%p316) target = $region44
        $region43: #{tpu_custom_call.1} parent=27 // pred_region
          %v319 = vld [vmem:[#allocation2] sm:$0xff]
          %vm320 = vcmask 130048
          %321 = vst.msk [vmem:[%s220] sm:$0xff] %vm320, %v319
          %323 = vrot.lane.b32.xlu0 %v319, 112
          %v324 = vpop.permute.xlu0 %323
          %s326 = scalar_lea.vmem %s220, 8 [#allocation8]
          %327 = vst.msk [vmem:[%s326] sm:$0xff] %vm320, %v324
          %328 = vrot.lane.b32.xlu0 %v319, 96
          %v329 = vpop.permute.xlu0 %328
          %s331 = scalar_lea.vmem %s220, 16 [#allocation8]
          %332 = vst.msk [vmem:[%s331] sm:$0xff] %vm320, %v329
          %333 = vrot.lane.b32.xlu0 %v319, 80
          %v334 = vpop.permute.xlu0 %333
          %s336 = scalar_lea.vmem %s220, 24 [#allocation8]
          %337 = vst.msk [vmem:[%s336] sm:$0xff] %vm320, %v334
        $region44: #{tpu_custom_call.1} parent=27 // pred_fallthru
          _
        %s338 = sand.u32 %s116, 1
        %s339 = scalar_lea.sflag [#allocation5], %s338
        %s340 = sand.u32 %s116, 1
        %s341 = smul.addr %s340, 32
        %s342 = scalar_lea.vmem [#allocation8], %s341
        // Predicated region
        $region45: #{tpu_custom_call.1} parent=27 // pred_check
          %p343 = pneg %p126
        $region46: #{tpu_custom_call.1} parent=27 // pred_check_branch
          %345 = sbr.rel (%p343) target = $region48
        $region47: #{tpu_custom_call.1} parent=27 // pred_region
          %s346 = smul.u32 4, %s27
          %s348 = ssub.s32 512, 512
          %349 = vsyncadd %s339, %s348
          %s350 = sadd.s32 %s28, %s346
          %s351 = smul.addr %s26, 4
          %s352 = sadd.s32 %s350, %s351
          %s353 = smul.addr %s352, 128
          %s354 = scalar_lea.hbm %s2, %s353
          %s355 = sshll.u32 %s342, 4
          %s356 = int_to_ptr.vmem [resolvable:$true] %s355
          %361 = dma.vmem_to_hbm [thread:$0]  %s356, 512, %s354, %s339, 128, 128, 8
        $region48: #{tpu_custom_call.1} parent=27 // pred_fallthru
          _
      $region28: #{tpu_custom_call.1} parent=5 // pred_fallthru
        _
      %p362 = scmp.le.s32.totalorder 2, %s15
      // Predicated region
      $region49: #{tpu_custom_call.1} parent=5 // pred_check
        %p363 = pneg %p362
      $region50: #{tpu_custom_call.1} parent=5 // pred_check_branch
        %365 = sbr.rel (%p363) target = $region52
      $region51: #{tpu_custom_call.1} parent=5 // pred_region
        %s366 = ssub.s32 %s15, 2
        // Predicated region
        $region53: #{tpu_custom_call.1} parent=51 // pred_check
          %p367 = pneg %p132
        $region54: #{tpu_custom_call.1} parent=51 // pred_check_branch
          %369 = sbr.rel (%p367) target = $region56
        $region55: #{tpu_custom_call.1} parent=51 // pred_region
          %s370 = sand.u32 %s117, 1
          %s371 = scalar_lea.sflag [#allocation5], %s370
          %s372 = sand.u32 %s117, 1
          %s373 = smul.addr %s372, 32
          %s374 = scalar_lea.vmem [#allocation8], %s373
          %375 = dma.done %s371, 512
        $region56: #{tpu_custom_call.1} parent=51 // pred_fallthru
          _
      $region52: #{tpu_custom_call.1} parent=5 // pred_fallthru
        _
    $region6: #{tpu_custom_call.1} parent=1 // loop_footer
      %s19 = sadd.s32 1, %s15
    $region7: #{tpu_custom_call.1} parent=1 // loop_footer_branch
      %14 = sbr.rel target = $region3
    $region8: #{tpu_custom_call.1} parent=1 // loop_exit
      _
    %376 = vsyncpa [#allocation4], 1
    %s377 = scalar_lea.sflag [#allocation4], 1
    %378 = vsyncpa %s377, 1
    %379 = vsyncpa [#allocation7], 1
    %380 = vsyncpa [#allocation5], 1
    %s381 = scalar_lea.sflag [#allocation5], 1
    %382 = vsyncpa %s381, 1

</llo_original>
